<compile_context>
chip_gen: v7x
topology: tpu7x:2x2x1
jax: 0.10.0
libtpu: 0.0.40
codegen_flags: <defaults>
</compile_context>

<pallas_src>
import jax
import jax.numpy as jnp
from jax.experimental import pallas as pl
from jax.experimental.pallas import tpu as pltpu


def distance_weights(height: int, in_height=None):
    """Euclidean distances between cell centers of an (height x height) output
    grid and an (in_height x in_height) input grid on the unit square.
    Returns (height**2, in_height**2) float32."""
    in_height = in_height or height
    co = (jnp.arange(height, dtype=jnp.float32) + 0.5) / height
    ci = (jnp.arange(in_height, dtype=jnp.float32) + 0.5) / in_height
    yo, xo = jnp.meshgrid(co, co, indexing="ij")
    yi, xi = jnp.meshgrid(ci, ci, indexing="ij")
    out_pos = jnp.stack([yo.ravel(), xo.ravel()], axis=-1)          # (H^2, 2)
    in_pos = jnp.stack([yi.ravel(), xi.ravel()], axis=-1)           # (I^2, 2)
    diff = out_pos[:, None, :] - in_pos[None, :, :]                 # (H^2, I^2, 2)
    return jnp.sqrt(jnp.sum(diff * diff, axis=-1))


def _wiring_cost_kernel(w_ref, d_ref, o_ref, acc_ref):
    """Grid = (n_parallel, n_inner).  Per step: elementwise |w|*dist accumulated
    into a block-shaped VMEM accumulator; one reduce-to-scalar in the final step
    of each parallel slot, broadcast into that slot's (8,128) output block."""
    b = pl.program_id(1)

    @pl.when(b == 0)
    def _init():
        acc_ref[...] = jnp.zeros_like(acc_ref)

    # Hot path: loads + VPU only.  d_ref is (1, L), broadcast across the batch
    # (sublane) axis of the (Bt, L) weight block.
    acc_ref[...] += jnp.abs(w_ref[...]) * d_ref[...]

    @pl.when(b == pl.num_programs(1) - 1)
    def _finalize():
        total = jnp.sum(acc_ref[...])                       # one XLU reduce / slot
        o_ref[...] = jnp.full(o_ref.shape, total, dtype=o_ref.dtype)


def _choose_tiling(batch, row_elems, target_block_bytes):
    """Pick (batch_tile, n_parallel, n_inner) for a lane-dense (B, L) layout."""
    row_bytes = row_elems * 4
    bt = max(1, int(target_block_bytes) // row_bytes)
    if bt >= batch:
        # Whole problem fits in one block -> single grid step, no padding needed
        # (block shape == full array shape satisfies the tiling constraint).
        return batch, 1, 1
    bt = max(8, (bt // 8) * 8)                  # sublane-align the batch tile
    n_blocks = -(-batch // bt)
    n_par = 2 if n_blocks >= 2 else 1           # split across 2 TCs on v7x
    n_inner = -(-n_blocks // n_par)
    return bt, n_par, n_inner


def wiring_cost_pallas(weight, dist, *, height: int, lambd: float = 1.0,
                       target_block_bytes: int = 8 << 20):
    """Pallas implementation of WiringCost.forward.

    weight: (B, height**2, in_height**2)
    dist:   (height**2, in_height**2)   (already sqrt(1 + d**2)-transformed)
    returns: scalar float32
    """
    B, H2, I2 = weight.shape
    assert dist.shape == (H2, I2)
    L = H2 * I2

    # Lane-dense, contiguous views (free reshapes in HBM).
    w2 = weight.reshape(B, L).astype(jnp.float32)
    d2 = dist.reshape(1, L).astype(jnp.float32)

    bt, n_par, n_inner = _choose_tiling(B, L, target_block_bytes)
    b_padded = bt * n_par * n_inner
    if b_padded != B:
        # Zero-pad the batch tail: |0| * dist contributes nothing to the sum.
        w2 = jnp.pad(w2, ((0, b_padded - B), (0, 0)))

    # Explicit VMEM budget: 2x weight block (double buffer) + accumulator block
    # + 2x dist + outputs + headroom.  Clamp into [32 MiB, 60 MiB] so it exceeds
    # the v5e/v6e scoped defaults but stays under v7x's 64 MiB physical VMEM.
    block_bytes = bt * L * 4
    est = 3 * block_bytes + 2 * L * 4 + 2 * n_par * 8 * 128 * 4 + (8 << 20)
    vmem_limit = int(min(max(est, 32 << 20), 60 << 20))

    out = pl.pallas_call(
        _wiring_cost_kernel,
        out_shape=jax.ShapeDtypeStruct((n_par * 8, 128), jnp.float32),
        grid_spec=pltpu.PrefetchScalarGridSpec(
            num_scalar_prefetch=0,
            grid=(n_par, n_inner),
            in_specs=[
                # (Bt, L) lane-dense weight blocks streamed along the inner axis.
                pl.BlockSpec((bt, L), lambda p, b: (p * n_inner + b, 0)),
                # dist: constant block index -> stays resident in VMEM.
                pl.BlockSpec((1, L), lambda p, b: (0, 0)),
            ],
            # One (8,128) partial-sum slab per parallel slot.
            out_specs=pl.BlockSpec((8, 128), lambda p, b: (p, 0)),
            # Block-shaped f32 accumulator (deferred reduction).
            scratch_shapes=[pltpu.VMEM((bt, L), jnp.float32)],
        ),
        compiler_params=pltpu.CompilerParams(
            dimension_semantics=("parallel", "arbitrary"),
            vmem_limit_bytes=vmem_limit,
        ),
    )(w2, d2)

    # Each parallel slot broadcast its scalar partial across its (8,128) block.
    partials = out.reshape(n_par, 8, 128)[:, 0, 0]
    total = jnp.sum(partials)
    return (float(lambd) / (height ** 2)) * total / B


def wiring_cost_ref(weight, dist, *, height: int, lambd: float = 1.0):
    cost = jnp.sum(jnp.abs(weight) * dist, axis=(-2, -1))
    return (lambd / height ** 2) * jnp.mean(cost)


if __name__ == "__main__":
    height = 8
    in_height = 8
    lambd = 1.0

    # Deterministic "buffer" setup (module __init__): dist = sqrt(1 + d**2)
    dist = distance_weights(height, in_height)
    dist = jnp.sqrt(1.0 + dist ** 2).astype(jnp.float32)

    key = jax.random.PRNGKey(0)
    k1, k2 = jax.random.split(key)

    # Test 1: demo-sized batch -> collapses to a single lane-dense grid step.
    w_small = jax.random.normal(
        k1, (2, height ** 2, in_height ** 2), dtype=jnp.float32)
    out_small = jax.block_until_ready(
        wiring_cost_pallas(w_small, dist, height=height, lambd=lambd))
    ref_small = wiring_cost_ref(w_small, dist, height=height, lambd=lambd)
    assert jnp.allclose(out_small, ref_small, rtol=1e-4, atol=1e-5), (
        out_small, ref_small)

    # Test 2: larger batch with a deliberately small block budget to exercise
    # the tiled, zero-padded, two-way-parallel accumulation path.
    w_big = jax.random.normal(
        k2, (40, height ** 2, in_height ** 2), dtype=jnp.float32)
    small_budget = 3 * (height ** 2) * (in_height ** 2) * 4   # ~3 rows per block
    out_big = jax.block_until_ready(
        wiring_cost_pallas(w_big, dist, height=height, lambd=lambd,
                           target_block_bytes=small_budget))
    ref_big = wiring_cost_ref(w_big, dist, height=height, lambd=lambd)
    assert jnp.allclose(out_big, ref_big, rtol=1e-4, atol=1e-5), (
        out_big, ref_big)

    print("KERNEL_OK")
</pallas_src>

<mosaic_0001>
module attributes {stable_mosaic.version = 11 : i64} {
  func.func @_wiring_cost_kernel(%arg0: i32, %arg1: i32, %arg2: memref<2x4096xf32, #tpu.memory_space<vmem>>, %arg3: memref<1x4096xf32, #tpu.memory_space<vmem>>, %arg4: memref<8x128xf32, #tpu.memory_space<vmem>>, %arg5: memref<2x4096xf32, #tpu.memory_space<vmem>>) attributes {dimension_semantics = [#tpu.dimension_semantics<parallel>, #tpu.dimension_semantics<arbitrary>], iteration_bounds = array<i64: 1, 1>, scalar_prefetch = 0 : i64, scratch_operands = 1 : i64, tpu.core_type = #tpu.core_type<tc>, window_params = [{transform_indices = @transform_0, window_bounds = array<i64: 2, 4096>}, {pipeline_mode = #tpu.pipeline_mode<synchronous>, transform_indices = @transform_1, window_bounds = array<i64: 1, 4096>}, {transform_indices = @transform_2, window_bounds = array<i64: 8, 128>}]} {
    %c0_i32 = arith.constant 0 : i32
    %0 = arith.cmpi eq, %arg1, %c0_i32 : i32
    %1 = arith.extui %0 : i1 to i32
    %c0_i32_0 = arith.constant 0 : i32
    %2 = arith.cmpi ne, %1, %c0_i32_0 : i32
    scf.if %2 {
      %cst = arith.constant 0.000000e+00 : f32
      %14 = vector.broadcast %cst : f32 to vector<2x4096xf32>
      %c0_10 = arith.constant 0 : index
      %c0_11 = arith.constant 0 : index
      %15 = vector.load %arg5[%c0_10, %c0_11] : memref<2x4096xf32, #tpu.memory_space<vmem>>, vector<2x4096xf32>
      tpu.vector_store %arg5[%c0_10, %c0_11], %14 {strides = array<i32>} : memref<2x4096xf32, #tpu.memory_space<vmem>>, vector<2x4096xf32>,
    } else {
    }
    %c0 = arith.constant 0 : index
    %c0_1 = arith.constant 0 : index
    %3 = vector.load %arg5[%c0, %c0_1] : memref<2x4096xf32, #tpu.memory_space<vmem>>, vector<2x4096xf32>
    %c0_2 = arith.constant 0 : index
    %c0_3 = arith.constant 0 : index
    %4 = vector.load %arg2[%c0_2, %c0_3] : memref<2x4096xf32, #tpu.memory_space<vmem>>, vector<2x4096xf32>
    %5 = math.absf %4 : vector<2x4096xf32>
    %c0_4 = arith.constant 0 : index
    %c0_5 = arith.constant 0 : index
    %6 = vector.load %arg3[%c0_4, %c0_5] : memref<1x4096xf32, #tpu.memory_space<vmem>>, vector<1x4096xf32>
    %7 = vector.broadcast %6 : vector<1x4096xf32> to vector<2x4096xf32>
    %8 = arith.mulf %5, %7 : vector<2x4096xf32>
    %9 = arith.addf %3, %8 : vector<2x4096xf32>
    %c0_6 = arith.constant 0 : index
    %c0_7 = arith.constant 0 : index
    %10 = vector.load %arg5[%c0_6, %c0_7] : memref<2x4096xf32, #tpu.memory_space<vmem>>, vector<2x4096xf32>
    tpu.vector_store %arg5[%c0_6, %c0_7], %9 {strides = array<i32>} : memref<2x4096xf32, #tpu.memory_space<vmem>>, vector<2x4096xf32>,
    %c0_i32_8 = arith.constant 0 : i32
    %11 = arith.cmpi eq, %arg1, %c0_i32_8 : i32
    %12 = arith.extui %11 : i1 to i32
    %c0_i32_9 = arith.constant 0 : i32
    %13 = arith.cmpi ne, %12, %c0_i32_9 : i32
    scf.if %13 {
      %c0_10 = arith.constant 0 : index
      %c0_11 = arith.constant 0 : index
      %14 = vector.load %arg5[%c0_10, %c0_11] : memref<2x4096xf32, #tpu.memory_space<vmem>>, vector<2x4096xf32>
      %15 = vector.shape_cast %14 : vector<2x4096xf32> to vector<1x2x4096xf32>
      %cst = arith.constant dense<0.000000e+00> : vector<1xf32>
      %16 = vector.multi_reduction <add>, %15, %cst [1, 2] : vector<1x2x4096xf32> to vector<1xf32>
      %17 = vector.shape_cast %16 : vector<1xf32> to vector<1x1x1xf32>
      %18 = vector.extract %17[0, 0, 0] : f32 from vector<1x1x1xf32>
      %19 = vector.broadcast %18 : f32 to vector<8x128xf32>
      %c0_12 = arith.constant 0 : index
      %c0_13 = arith.constant 0 : index
      %20 = vector.load %arg4[%c0_12, %c0_13] : memref<8x128xf32, #tpu.memory_space<vmem>>, vector<8x128xf32>
      tpu.vector_store %arg4[%c0_12, %c0_13], %19 {strides = array<i32>} : memref<8x128xf32, #tpu.memory_space<vmem>>, vector<8x128xf32>,
    } else {
    }
    return
  }
  func.func @transform_0(%arg0: i32, %arg1: i32) -> (i32, i32) {
    %c1_i32 = arith.constant 1 : i32
    %0 = arith.muli %arg0, %c1_i32 : i32
    %1 = arith.addi %0, %arg1 : i32
    %c0_i32 = arith.constant 0 : i32
    %c0_i32_0 = arith.constant 0 : i32
    return %1, %c0_i32 : i32, i32
  }
  func.func @transform_1(%arg0: i32, %arg1: i32) -> (i32, i32) {
    %c0_i32 = arith.constant 0 : i32
    %c0_i32_0 = arith.constant 0 : i32
    %c0_i32_1 = arith.constant 0 : i32
    return %c0_i32, %c0_i32_0 : i32, i32
  }
  func.func @transform_2(%arg0: i32, %arg1: i32) -> (i32, i32) {
    %c0_i32 = arith.constant 0 : i32
    %c0_i32_0 = arith.constant 0 : i32
    return %arg0, %c0_i32 : i32, i32
  }
}

</mosaic_0001>

<llo_original>
// kernel: tpu_custom_call.1
$region0: #{tpu_custom_call.1}
  #allocation0 [shape = 'u32[]', space=smem, size = 0x4, offset = 0x4, fixed_abs, tag = 'smem constant byte address 0x4 - core index']
  #allocation1 [shape = 'u32[144,128]{1,0:T(1,128)}', space=vmem, size = 0x12000, scoped, tag = 'internal scratch']
  #allocation2 [shape = 'f32[2,4096]{1,0:T(2,128)}', space=vmem, size = 0x8000, scoped, tag = 'scratch operand']
  %s0 = inlined_call_operand.hbm [shape: f32[2,4096], index: 0, kind: input, shape index: {}]
  %s1 = inlined_call_operand.hbm [shape: f32[1,4096], index: 1, kind: input, shape index: {}]
  %s2 = inlined_call_operand.hbm [shape: f32[8,128], index: 2, kind: output, shape index: {}]
  %s3 = sld [smem:[#allocation0]]
  $region34: #{tpu_custom_call.1} parent=0
    _
  %s5 = ssub.s32 1, %s3
  %s6 = scalar_select 0, %s5, %s3
  $region1: #{tpu_custom_call.1} parent=0
    #allocation3 [shape = 'u8[32768]{0}', space=vmem, size = 0x8000, scoped, tag = 'input window, operand 0, single buffered']
    #allocation4 [shape = 's32[1]{0}', space=sflag, size = 0x4, scoped, tag = 'scoped memory for tpu_custom_call.1']
    #allocation5 [shape = 's32[1]{0}', space=sflag, size = 0x4, scoped, tag = 'scoped memory for tpu_custom_call.1']
    #allocation6 [shape = 'u8[16384]{0}', space=vmem, size = 0x4000, scoped, tag = 'input window, operand 1, single buffered']
    #allocation7 [shape = 's32[1]{0}', space=sflag, size = 0x4, scoped, tag = 'scoped memory for tpu_custom_call.1']
    #allocation8 [shape = 'u8[4096]{0}', space=vmem, size = 0x1000, scoped, tag = 'output window, operand 0, single buffered']
    %7 = vsyncpa [#allocation4], 0
    %8 = vsyncpa [#allocation7], 0
    %9 = vsyncpa [#allocation5], 0
    // Predicated region
    $region2: #{tpu_custom_call.1} parent=1 // pred_check
      _
    $region3: #{tpu_custom_call.1} parent=1 // pred_check_branch
      %11 = sbr.rel (0) target = $region5
    $region4: #{tpu_custom_call.1} parent=1 // pred_region
      %s12 = sadd.s32 0, 0
      %s14 = ssub.s32 1024, 1024
      %15 = vsyncadd [#allocation4], %s14
      %s16 = smul.addr %s12, 32
      %s17 = smul.addr %s16, 32
      %s18 = scalar_lea.hbm %s0, %s17
      %s20 = sshll.u32 [#allocation3], 4
      %s21 = int_to_ptr.vmem [resolvable:$true] %s20
      %23 = dma.hbm_to_vmem [thread:$0]  %s18, 1024, %s21, [#allocation4]
    $region5: #{tpu_custom_call.1} parent=1 // pred_fallthru
      _
    // Predicated region
    $region6: #{tpu_custom_call.1} parent=1 // pred_check
      _
    $region7: #{tpu_custom_call.1} parent=1 // pred_check_branch
      %25 = sbr.rel (0) target = $region9
    $region8: #{tpu_custom_call.1} parent=1 // pred_region
      %s27 = ssub.s32 512, 512
      %28 = vsyncadd [#allocation7], %s27
      %s30 = sshll.u32 [#allocation6], 4
      %s31 = int_to_ptr.vmem [resolvable:$true] %s30
      %33 = dma.hbm_to_vmem [thread:$0]  %s1, 512, %s31, [#allocation7]
    $region9: #{tpu_custom_call.1} parent=1 // pred_fallthru
      _
    // Predicated region
    $region10: #{tpu_custom_call.1} parent=1 // pred_check
      _
    $region11: #{tpu_custom_call.1} parent=1 // pred_check_branch
      %35 = sbr.rel (0) target = $region13
    $region12: #{tpu_custom_call.1} parent=1 // pred_region
      %36 = dma.done [#allocation4], 1024
    $region13: #{tpu_custom_call.1} parent=1 // pred_fallthru
      _
    // Predicated region
    $region14: #{tpu_custom_call.1} parent=1 // pred_check
      _
    $region15: #{tpu_custom_call.1} parent=1 // pred_check_branch
      %38 = sbr.rel (0) target = $region17
    $region16: #{tpu_custom_call.1} parent=1 // pred_region
      %39 = dma.done [#allocation7], 512
    $region17: #{tpu_custom_call.1} parent=1 // pred_fallthru
      _
    %s40 = sadd.s32 0, 0
    %p41 = scmp.eq.s32.totalorder 0, 0
    // Predicated region
    $region18: #{tpu_custom_call.1} parent=1 // pred_check
      %p42 = pneg %p41
    $region19: #{tpu_custom_call.1} parent=1 // pred_check_branch
      %44 = sbr.rel (%p42) target = $region21
    $region20: #{tpu_custom_call.1} parent=1 // pred_region
      %45 = vst [vmem:[#allocation2] sm:$0xff] 0.0
      %46 = vst [vmem:[#allocation2 + $0x8] sm:$0xff] 0.0
      %47 = vst [vmem:[#allocation2 + $0x10] sm:$0xff] 0.0
      %48 = vst [vmem:[#allocation2 + $0x18] sm:$0xff] 0.0
      %49 = vst [vmem:[#allocation2 + $0x20] sm:$0xff] 0.0
      %50 = vst [vmem:[#allocation2 + $0x28] sm:$0xff] 0.0
      %51 = vst [vmem:[#allocation2 + $0x30] sm:$0xff] 0.0
      %52 = vst [vmem:[#allocation2 + $0x38] sm:$0xff] 0.0
    $region21: #{tpu_custom_call.1} parent=1 // pred_fallthru
      _
    %v53 = vld [vmem:[#allocation2] sm:$0xff]
    %v54 = vld [vmem:[#allocation2 + $0x8] sm:$0xff]
    %v55 = vld [vmem:[#allocation2 + $0x10] sm:$0xff]
    %v56 = vld [vmem:[#allocation2 + $0x18] sm:$0xff]
    %v57 = vld [vmem:[#allocation2 + $0x20] sm:$0xff]
    %v58 = vld [vmem:[#allocation2 + $0x28] sm:$0xff]
    %v59 = vld [vmem:[#allocation2 + $0x30] sm:$0xff]
    %v60 = vld [vmem:[#allocation2 + $0x38] sm:$0xff]
    %v61 = vld [vmem:[#allocation3] sm:$0xff]
    %v62 = vld [vmem:[#allocation3 + $0x8] sm:$0xff]
    %v63 = vld [vmem:[#allocation3 + $0x10] sm:$0xff]
    %v64 = vld [vmem:[#allocation3 + $0x18] sm:$0xff]
    %v65 = vld [vmem:[#allocation3 + $0x20] sm:$0xff]
    %v66 = vld [vmem:[#allocation3 + $0x28] sm:$0xff]
    %v67 = vld [vmem:[#allocation3 + $0x30] sm:$0xff]
    %v68 = vld [vmem:[#allocation3 + $0x38] sm:$0xff]
    %v69 = vand.u32 2147483647, %v61
    %v70 = vand.u32 2147483647, %v62
    %v71 = vand.u32 2147483647, %v63
    %v72 = vand.u32 2147483647, %v64
    %v73 = vand.u32 2147483647, %v65
    %v74 = vand.u32 2147483647, %v66
    %v75 = vand.u32 2147483647, %v67
    %v76 = vand.u32 2147483647, %v68
    %v77 = vld [vmem:[#allocation6] sm:$0xff]
    %v78 = vld [vmem:[#allocation6 + $0x8] sm:$0xff]
    %v79 = vld [vmem:[#allocation6 + $0x10] sm:$0xff]
    %v80 = vld [vmem:[#allocation6 + $0x18] sm:$0xff]
    %v85 = vlaneseq
    %v86 = vshrl.u32 %v85, 7
    %v87 = vsub.s32 0, %v86
    %v88 = vrot.slane %v77, %v87
    %v89 = vlaneseq
    %v90 = vshrl.u32 %v89, 7
    %v91 = vsub.s32 1, %v90
    %v92 = vrot.slane %v77, %v91
    %v93 = vlaneseq
    %v94 = vshrl.u32 %v93, 7
    %v95 = vsub.s32 2, %v94
    %v96 = vrot.slane %v77, %v95
    %v97 = vlaneseq
    %v98 = vshrl.u32 %v97, 7
    %v99 = vsub.s32 3, %v98
    %v100 = vrot.slane %v77, %v99
    %v101 = vlaneseq
    %v102 = vshrl.u32 %v101, 7
    %v103 = vsub.s32 4, %v102
    %v104 = vrot.slane %v77, %v103
    %v105 = vlaneseq
    %v106 = vshrl.u32 %v105, 7
    %v107 = vsub.s32 5, %v106
    %v108 = vrot.slane %v77, %v107
    %v109 = vlaneseq
    %v110 = vshrl.u32 %v109, 7
    %v111 = vsub.s32 6, %v110
    %v112 = vrot.slane %v77, %v111
    %v113 = vlaneseq
    %v114 = vshrl.u32 %v113, 7
    %v115 = vsub.s32 7, %v114
    %v116 = vrot.slane %v77, %v115
    %v117 = vlaneseq
    %v118 = vshrl.u32 %v117, 7
    %v119 = vsub.s32 0, %v118
    %v120 = vrot.slane %v78, %v119
    %v121 = vlaneseq
    %v122 = vshrl.u32 %v121, 7
    %v123 = vsub.s32 1, %v122
    %v124 = vrot.slane %v78, %v123
    %v125 = vlaneseq
    %v126 = vshrl.u32 %v125, 7
    %v127 = vsub.s32 2, %v126
    %v128 = vrot.slane %v78, %v127
    %v129 = vlaneseq
    %v130 = vshrl.u32 %v129, 7
    %v131 = vsub.s32 3, %v130
    %v132 = vrot.slane %v78, %v131
    %v133 = vlaneseq
    %v134 = vshrl.u32 %v133, 7
    %v135 = vsub.s32 4, %v134
    %v136 = vrot.slane %v78, %v135
    %v137 = vlaneseq
    %v138 = vshrl.u32 %v137, 7
    %v139 = vsub.s32 5, %v138
    %v140 = vrot.slane %v78, %v139
    %v141 = vlaneseq
    %v142 = vshrl.u32 %v141, 7
    %v143 = vsub.s32 6, %v142
    %v144 = vrot.slane %v78, %v143
    %v145 = vlaneseq
    %v146 = vshrl.u32 %v145, 7
    %v147 = vsub.s32 7, %v146
    %v148 = vrot.slane %v78, %v147
    %v149 = vlaneseq
    %v150 = vshrl.u32 %v149, 7
    %v151 = vsub.s32 0, %v150
    %v152 = vrot.slane %v79, %v151
    %v153 = vlaneseq
    %v154 = vshrl.u32 %v153, 7
    %v155 = vsub.s32 1, %v154
    %v156 = vrot.slane %v79, %v155
    %v157 = vlaneseq
    %v158 = vshrl.u32 %v157, 7
    %v159 = vsub.s32 2, %v158
    %v160 = vrot.slane %v79, %v159
    %v161 = vlaneseq
    %v162 = vshrl.u32 %v161, 7
    %v163 = vsub.s32 3, %v162
    %v164 = vrot.slane %v79, %v163
    %v165 = vlaneseq
    %v166 = vshrl.u32 %v165, 7
    %v167 = vsub.s32 4, %v166
    %v168 = vrot.slane %v79, %v167
    %v169 = vlaneseq
    %v170 = vshrl.u32 %v169, 7
    %v171 = vsub.s32 5, %v170
    %v172 = vrot.slane %v79, %v171
    %v173 = vlaneseq
    %v174 = vshrl.u32 %v173, 7
    %v175 = vsub.s32 6, %v174
    %v176 = vrot.slane %v79, %v175
    %v177 = vlaneseq
    %v178 = vshrl.u32 %v177, 7
    %v179 = vsub.s32 7, %v178
    %v180 = vrot.slane %v79, %v179
    %v181 = vlaneseq
    %v182 = vshrl.u32 %v181, 7
    %v183 = vsub.s32 0, %v182
    %v184 = vrot.slane %v80, %v183
    %v185 = vlaneseq
    %v186 = vshrl.u32 %v185, 7
    %v187 = vsub.s32 1, %v186
    %v188 = vrot.slane %v80, %v187
    %v189 = vlaneseq
    %v190 = vshrl.u32 %v189, 7
    %v191 = vsub.s32 2, %v190
    %v192 = vrot.slane %v80, %v191
    %v193 = vlaneseq
    %v194 = vshrl.u32 %v193, 7
    %v195 = vsub.s32 3, %v194
    %v196 = vrot.slane %v80, %v195
    %v197 = vlaneseq
    %v198 = vshrl.u32 %v197, 7
    %v199 = vsub.s32 4, %v198
    %v200 = vrot.slane %v80, %v199
    %v201 = vlaneseq
    %v202 = vshrl.u32 %v201, 7
    %v203 = vsub.s32 5, %v202
    %v204 = vrot.slane %v80, %v203
    %v205 = vlaneseq
    %v206 = vshrl.u32 %v205, 7
    %v207 = vsub.s32 6, %v206
    %v208 = vrot.slane %v80, %v207
    %v209 = vlaneseq
    %v210 = vshrl.u32 %v209, 7
    %v211 = vsub.s32 7, %v210
    %v212 = vrot.slane %v80, %v211
    %v213 = vcombine.low %v88, %v92
    %v214 = vcombine.low %v96, %v100
    %v216 = vunpack.c.l.s4 1983009808
    %v217 = vunpack.c.0.s8 %v216
    %v218 = vlaneseq
    %v219 = vshrl.u32 %v218, 7
    %v220 = vsub.s32 %v217, %v219
    %v221 = vrot.slane %v213, %v220
    %v223 = vunpack.c.l.s4 1983009808
    %v224 = vunpack.c.0.s8 %v223
    %v225 = vlaneseq
    %v226 = vshrl.u32 %v225, 7
    %v227 = vsub.s32 %v224, %v226
    %v228 = vrot.slane %v214, %v227
    %v229 = vcombine.low %v221, %v228
    %v230 = vcombine.low %v104, %v108
    %v231 = vcombine.low %v112, %v116
    %v233 = vunpack.c.l.s4 1983009808
    %v234 = vunpack.c.0.s8 %v233
    %v235 = vlaneseq
    %v236 = vshrl.u32 %v235, 7
    %v237 = vsub.s32 %v234, %v236
    %v238 = vrot.slane %v230, %v237
    %v240 = vunpack.c.l.s4 1983009808
    %v241 = vunpack.c.0.s8 %v240
    %v242 = vlaneseq
    %v243 = vshrl.u32 %v242, 7
    %v244 = vsub.s32 %v241, %v243
    %v245 = vrot.slane %v231, %v244
    %v246 = vcombine.low %v238, %v245
    %v247 = vcombine.low %v120, %v124
    %v248 = vcombine.low %v128, %v132
    %v250 = vunpack.c.l.s4 1983009808
    %v251 = vunpack.c.0.s8 %v250
    %v252 = vlaneseq
    %v253 = vshrl.u32 %v252, 7
    %v254 = vsub.s32 %v251, %v253
    %v255 = vrot.slane %v247, %v254
    %v257 = vunpack.c.l.s4 1983009808
    %v258 = vunpack.c.0.s8 %v257
    %v259 = vlaneseq
    %v260 = vshrl.u32 %v259, 7
    %v261 = vsub.s32 %v258, %v260
    %v262 = vrot.slane %v248, %v261
    %v263 = vcombine.low %v255, %v262
    %v264 = vcombine.low %v136, %v140
    %v265 = vcombine.low %v144, %v148
    %v267 = vunpack.c.l.s4 1983009808
    %v268 = vunpack.c.0.s8 %v267
    %v269 = vlaneseq
    %v270 = vshrl.u32 %v269, 7
    %v271 = vsub.s32 %v268, %v270
    %v272 = vrot.slane %v264, %v271
    %v274 = vunpack.c.l.s4 1983009808
    %v275 = vunpack.c.0.s8 %v274
    %v276 = vlaneseq
    %v277 = vshrl.u32 %v276, 7
    %v278 = vsub.s32 %v275, %v277
    %v279 = vrot.slane %v265, %v278
    %v280 = vcombine.low %v272, %v279
    %v281 = vcombine.low %v152, %v156
    %v282 = vcombine.low %v160, %v164
    %v284 = vunpack.c.l.s4 1983009808
    %v285 = vunpack.c.0.s8 %v284
    %v286 = vlaneseq
    %v287 = vshrl.u32 %v286, 7
    %v288 = vsub.s32 %v285, %v287
    %v289 = vrot.slane %v281, %v288
    %v291 = vunpack.c.l.s4 1983009808
    %v292 = vunpack.c.0.s8 %v291
    %v293 = vlaneseq
    %v294 = vshrl.u32 %v293, 7
    %v295 = vsub.s32 %v292, %v294
    %v296 = vrot.slane %v282, %v295
    %v297 = vcombine.low %v289, %v296
    %v298 = vcombine.low %v168, %v172
    %v299 = vcombine.low %v176, %v180
    %v301 = vunpack.c.l.s4 1983009808
    %v302 = vunpack.c.0.s8 %v301
    %v303 = vlaneseq
    %v304 = vshrl.u32 %v303, 7
    %v305 = vsub.s32 %v302, %v304
    %v306 = vrot.slane %v298, %v305
    %v308 = vunpack.c.l.s4 1983009808
    %v309 = vunpack.c.0.s8 %v308
    %v310 = vlaneseq
    %v311 = vshrl.u32 %v310, 7
    %v312 = vsub.s32 %v309, %v311
    %v313 = vrot.slane %v299, %v312
    %v314 = vcombine.low %v306, %v313
    %v315 = vcombine.low %v184, %v188
    %v316 = vcombine.low %v192, %v196
    %v318 = vunpack.c.l.s4 1983009808
    %v319 = vunpack.c.0.s8 %v318
    %v320 = vlaneseq
    %v321 = vshrl.u32 %v320, 7
    %v322 = vsub.s32 %v319, %v321
    %v323 = vrot.slane %v315, %v322
    %v325 = vunpack.c.l.s4 1983009808
    %v326 = vunpack.c.0.s8 %v325
    %v327 = vlaneseq
    %v328 = vshrl.u32 %v327, 7
    %v329 = vsub.s32 %v326, %v328
    %v330 = vrot.slane %v316, %v329
    %v331 = vcombine.low %v323, %v330
    %v332 = vcombine.low %v200, %v204
    %v333 = vcombine.low %v208, %v212
    %v335 = vunpack.c.l.s4 1983009808
    %v336 = vunpack.c.0.s8 %v335
    %v337 = vlaneseq
    %v338 = vshrl.u32 %v337, 7
    %v339 = vsub.s32 %v336, %v338
    %v340 = vrot.slane %v332, %v339
    %v342 = vunpack.c.l.s4 1983009808
    %v343 = vunpack.c.0.s8 %v342
    %v344 = vlaneseq
    %v345 = vshrl.u32 %v344, 7
    %v346 = vsub.s32 %v343, %v345
    %v347 = vrot.slane %v333, %v346
    %v348 = vcombine.low %v340, %v347
    %v357 = vmul.f32 %v69, %v229
    %v358 = vmul.f32 %v70, %v246
    %v359 = vmul.f32 %v71, %v263
    %v360 = vmul.f32 %v72, %v280
    %v361 = vmul.f32 %v73, %v297
    %v362 = vmul.f32 %v74, %v314
    %v363 = vmul.f32 %v75, %v331
    %v364 = vmul.f32 %v76, %v348
    %v365 = vadd.f32 %v53, %v357
    %v366 = vadd.f32 %v54, %v358
    %v367 = vadd.f32 %v55, %v359
    %v368 = vadd.f32 %v56, %v360
    %v369 = vadd.f32 %v57, %v361
    %v370 = vadd.f32 %v58, %v362
    %v371 = vadd.f32 %v59, %v363
    %v372 = vadd.f32 %v60, %v364
    %373 = vst [vmem:[#allocation2] sm:$0xff] %v365
    %374 = vst [vmem:[#allocation2 + $0x8] sm:$0xff] %v366
    %375 = vst [vmem:[#allocation2 + $0x10] sm:$0xff] %v367
    %376 = vst [vmem:[#allocation2 + $0x18] sm:$0xff] %v368
    %377 = vst [vmem:[#allocation2 + $0x20] sm:$0xff] %v369
    %378 = vst [vmem:[#allocation2 + $0x28] sm:$0xff] %v370
    %379 = vst [vmem:[#allocation2 + $0x30] sm:$0xff] %v371
    %380 = vst [vmem:[#allocation2 + $0x38] sm:$0xff] %v372
    // Predicated region
    $region22: #{tpu_custom_call.1} parent=1 // pred_check
      %p381 = pneg %p41
    $region23: #{tpu_custom_call.1} parent=1 // pred_check_branch
      %383 = sbr.rel (%p381) target = $region25
    $region24: #{tpu_custom_call.1} parent=1 // pred_region
      %v384 = vld [vmem:[#allocation2] sm:$0xff]
      %v385 = vld [vmem:[#allocation2 + $0x8] sm:$0xff]
      %v386 = vld [vmem:[#allocation2 + $0x10] sm:$0xff]
      %v387 = vld [vmem:[#allocation2 + $0x18] sm:$0xff]
      %v388 = vld [vmem:[#allocation2 + $0x20] sm:$0xff]
      %v389 = vld [vmem:[#allocation2 + $0x28] sm:$0xff]
      %v390 = vld [vmem:[#allocation2 + $0x30] sm:$0xff]
      %v391 = vld [vmem:[#allocation2 + $0x38] sm:$0xff]
      %v400 = vcombine.high %v384, %v384
      %v402 = vunpack.c.l.s4 1983009808
      %v403 = vunpack.c.0.s8 %v402
      %v404 = vlaneseq
      %v405 = vshrl.u32 %v404, 7
      %v406 = vsub.s32 %v403, %v405
      %v407 = vrot.slane %v384, %v406
      %v409 = vunpack.c.l.s4 1983009808
      %v410 = vunpack.c.0.s8 %v409
      %v411 = vlaneseq
      %v412 = vshrl.u32 %v411, 7
      %v413 = vsub.s32 %v410, %v412
      %v414 = vrot.slane %v400, %v413
      %v415 = vcombine.high %v407, %v407
      %v416 = vcombine.high %v414, %v414
      %v417 = vcombine.high %v385, %v385
      %v419 = vunpack.c.l.s4 1983009808
      %v420 = vunpack.c.0.s8 %v419
      %v421 = vlaneseq
      %v422 = vshrl.u32 %v421, 7
      %v423 = vsub.s32 %v420, %v422
      %v424 = vrot.slane %v385, %v423
      %v426 = vunpack.c.l.s4 1983009808
      %v427 = vunpack.c.0.s8 %v426
      %v428 = vlaneseq
      %v429 = vshrl.u32 %v428, 7
      %v430 = vsub.s32 %v427, %v429
      %v431 = vrot.slane %v417, %v430
      %v432 = vcombine.high %v424, %v424
      %v433 = vcombine.high %v431, %v431
      %v434 = vcombine.high %v386, %v386
      %v436 = vunpack.c.l.s4 1983009808
      %v437 = vunpack.c.0.s8 %v436
      %v438 = vlaneseq
      %v439 = vshrl.u32 %v438, 7
      %v440 = vsub.s32 %v437, %v439
      %v441 = vrot.slane %v386, %v440
      %v443 = vunpack.c.l.s4 1983009808
      %v444 = vunpack.c.0.s8 %v443
      %v445 = vlaneseq
      %v446 = vshrl.u32 %v445, 7
      %v447 = vsub.s32 %v444, %v446
      %v448 = vrot.slane %v434, %v447
      %v449 = vcombine.high %v441, %v441
      %v450 = vcombine.high %v448, %v448
      %v451 = vcombine.high %v387, %v387
      %v453 = vunpack.c.l.s4 1983009808
      %v454 = vunpack.c.0.s8 %v453
      %v455 = vlaneseq
      %v456 = vshrl.u32 %v455, 7
      %v457 = vsub.s32 %v454, %v456
      %v458 = vrot.slane %v387, %v457
      %v460 = vunpack.c.l.s4 1983009808
      %v461 = vunpack.c.0.s8 %v460
      %v462 = vlaneseq
      %v463 = vshrl.u32 %v462, 7
      %v464 = vsub.s32 %v461, %v463
      %v465 = vrot.slane %v451, %v464
      %v466 = vcombine.high %v458, %v458
      %v467 = vcombine.high %v465, %v465
      %v468 = vcombine.high %v388, %v388
      %v470 = vunpack.c.l.s4 1983009808
      %v471 = vunpack.c.0.s8 %v470
      %v472 = vlaneseq
      %v473 = vshrl.u32 %v472, 7
      %v474 = vsub.s32 %v471, %v473
      %v475 = vrot.slane %v388, %v474
      %v477 = vunpack.c.l.s4 1983009808
      %v478 = vunpack.c.0.s8 %v477
      %v479 = vlaneseq
      %v480 = vshrl.u32 %v479, 7
      %v481 = vsub.s32 %v478, %v480
      %v482 = vrot.slane %v468, %v481
      %v483 = vcombine.high %v475, %v475
      %v484 = vcombine.high %v482, %v482
      %v485 = vcombine.high %v389, %v389
      %v487 = vunpack.c.l.s4 1983009808
      %v488 = vunpack.c.0.s8 %v487
      %v489 = vlaneseq
      %v490 = vshrl.u32 %v489, 7
      %v491 = vsub.s32 %v488, %v490
      %v492 = vrot.slane %v389, %v491
      %v494 = vunpack.c.l.s4 1983009808
      %v495 = vunpack.c.0.s8 %v494
      %v496 = vlaneseq
      %v497 = vshrl.u32 %v496, 7
      %v498 = vsub.s32 %v495, %v497
      %v499 = vrot.slane %v485, %v498
      %v500 = vcombine.high %v492, %v492
      %v501 = vcombine.high %v499, %v499
      %v502 = vcombine.high %v390, %v390
      %v504 = vunpack.c.l.s4 1983009808
      %v505 = vunpack.c.0.s8 %v504
      %v506 = vlaneseq
      %v507 = vshrl.u32 %v506, 7
      %v508 = vsub.s32 %v505, %v507
      %v509 = vrot.slane %v390, %v508
      %v511 = vunpack.c.l.s4 1983009808
      %v512 = vunpack.c.0.s8 %v511
      %v513 = vlaneseq
      %v514 = vshrl.u32 %v513, 7
      %v515 = vsub.s32 %v512, %v514
      %v516 = vrot.slane %v502, %v515
      %v517 = vcombine.high %v509, %v509
      %v518 = vcombine.high %v516, %v516
      %v519 = vcombine.high %v391, %v391
      %v521 = vunpack.c.l.s4 1983009808
      %v522 = vunpack.c.0.s8 %v521
      %v523 = vlaneseq
      %v524 = vshrl.u32 %v523, 7
      %v525 = vsub.s32 %v522, %v524
      %v526 = vrot.slane %v391, %v525
      %v528 = vunpack.c.l.s4 1983009808
      %v529 = vunpack.c.0.s8 %v528
      %v530 = vlaneseq
      %v531 = vshrl.u32 %v530, 7
      %v532 = vsub.s32 %v529, %v531
      %v533 = vrot.slane %v519, %v532
      %v534 = vcombine.high %v526, %v526
      %v535 = vcombine.high %v533, %v533
      %vm568 = vcmask 1041408
      %v569 = vsel %vm568, %v407, 0.0
      %v570 = vsel %vm568, %v415, 0.0
      %v571 = vadd.f32 %v569, %v570
      %v572 = vsel %vm568, %v414, 0.0
      %v573 = vadd.f32 %v571, %v572
      %v574 = vsel %vm568, %v416, 0.0
      %v575 = vadd.f32 %v573, %v574
      %v576 = vsel %vm568, %v424, 0.0
      %v577 = vadd.f32 %v575, %v576
      %v578 = vsel %vm568, %v432, 0.0
      %v579 = vadd.f32 %v577, %v578
      %v580 = vsel %vm568, %v431, 0.0
      %v581 = vadd.f32 %v579, %v580
      %v582 = vsel %vm568, %v433, 0.0
      %v583 = vadd.f32 %v581, %v582
      %v584 = vsel %vm568, %v441, 0.0
      %v585 = vadd.f32 %v583, %v584
      %v586 = vsel %vm568, %v449, 0.0
      %v587 = vadd.f32 %v585, %v586
      %v588 = vsel %vm568, %v448, 0.0
      %v589 = vadd.f32 %v587, %v588
      %v590 = vsel %vm568, %v450, 0.0
      %v591 = vadd.f32 %v589, %v590
      %v592 = vsel %vm568, %v458, 0.0
      %v593 = vadd.f32 %v591, %v592
      %v594 = vsel %vm568, %v466, 0.0
      %v595 = vadd.f32 %v593, %v594
      %v596 = vsel %vm568, %v465, 0.0
      %v597 = vadd.f32 %v595, %v596
      %v598 = vsel %vm568, %v467, 0.0
      %v599 = vadd.f32 %v597, %v598
      %v600 = vsel %vm568, %v475, 0.0
      %v601 = vadd.f32 %v599, %v600
      %v602 = vsel %vm568, %v483, 0.0
      %v603 = vadd.f32 %v601, %v602
      %v604 = vsel %vm568, %v482, 0.0
      %v605 = vadd.f32 %v603, %v604
      %v606 = vsel %vm568, %v484, 0.0
      %v607 = vadd.f32 %v605, %v606
      %v608 = vsel %vm568, %v492, 0.0
      %v609 = vadd.f32 %v607, %v608
      %v610 = vsel %vm568, %v500, 0.0
      %v611 = vadd.f32 %v609, %v610
      %v612 = vsel %vm568, %v499, 0.0
      %v613 = vadd.f32 %v611, %v612
      %v614 = vsel %vm568, %v501, 0.0
      %v615 = vadd.f32 %v613, %v614
      %v616 = vsel %vm568, %v509, 0.0
      %v617 = vadd.f32 %v615, %v616
      %v618 = vsel %vm568, %v517, 0.0
      %v619 = vadd.f32 %v617, %v618
      %v620 = vsel %vm568, %v516, 0.0
      %v621 = vadd.f32 %v619, %v620
      %v622 = vsel %vm568, %v518, 0.0
      %v623 = vadd.f32 %v621, %v622
      %v624 = vsel %vm568, %v526, 0.0
      %v625 = vadd.f32 %v623, %v624
      %v626 = vsel %vm568, %v534, 0.0
      %v627 = vadd.f32 %v625, %v626
      %v628 = vsel %vm568, %v533, 0.0
      %v629 = vadd.f32 %v627, %v628
      %v630 = vsel %vm568, %v535, 0.0
      %v631 = vadd.f32 %v629, %v630
      %632 = vadd.xlane.f32.xlu0 %v631
      %v633 = vpop.xlane.xlu0 %632
      %v634 = vrot.slane %v633, 4
      %v635 = vadd.f32 %v633, %v634
      %v636 = vrot.slane %v635, 2
      %v637 = vadd.f32 %v635, %v636
      %v638 = vrot.slane %v637, 1
      %v639 = vadd.f32 %v637, %v638
      %s640 = vtos %v639
      %v641 = vstv %s640
      %642 = vst [vmem:[#allocation8] sm:$0xff] %v641
    $region25: #{tpu_custom_call.1} parent=1 // pred_fallthru
      _
    // Predicated region
    $region26: #{tpu_custom_call.1} parent=1 // pred_check
      _
    $region27: #{tpu_custom_call.1} parent=1 // pred_check_branch
      %644 = sbr.rel (0) target = $region29
    $region28: #{tpu_custom_call.1} parent=1 // pred_region
      %s646 = ssub.s32 128, 128
      %647 = vsyncadd [#allocation5], %s646
      %s649 = sshll.u32 [#allocation8], 4
      %s650 = int_to_ptr.vmem [resolvable:$true] %s649
      %652 = dma.vmem_to_hbm [thread:$0]  %s650, 128, %s2, [#allocation5]
    $region29: #{tpu_custom_call.1} parent=1 // pred_fallthru
      _
    // Predicated region
    $region30: #{tpu_custom_call.1} parent=1 // pred_check
      _
    $region31: #{tpu_custom_call.1} parent=1 // pred_check_branch
      %654 = sbr.rel (0) target = $region33
    $region32: #{tpu_custom_call.1} parent=1 // pred_region
      %655 = dma.done [#allocation5], 128
    $region33: #{tpu_custom_call.1} parent=1 // pred_fallthru
      _
    %656 = vsyncpa [#allocation4], 1
    %657 = vsyncpa [#allocation7], 1
    %658 = vsyncpa [#allocation5], 1

</llo_original>
